<compile_context>
chip_gen: v5e
topology: v5e:2x2
jax: 0.10.0
libtpu: 0.0.40
codegen_flags: <defaults>
</compile_context>

<pallas_src>
import jax
import jax.numpy as jnp
from jax.experimental import pallas as pl
from jax.experimental.pallas import tpu as pltpu


def logistic_kernel(x_ref, w_ref, b_ref, o_ref):
    tile_b = x_ref.shape[0]
    x = x_ref[...]                                   # (tile_b, F) f32, streamed
    w = w_ref[...]                                   # (1, F) f32, resident, lane-dense
    z = jnp.sum(x * w, axis=-1, keepdims=True)       # VPU mul + XLU lane reduce -> (tile_b, 1)
    y = jax.nn.sigmoid(z + b_ref[0, 0])              # scalar bias from SMEM, EUP sigmoid
    # Lane-densify the store: (tile_b, 1) -> (1, tile_b) so writeback is a
    # full-width unmasked vst instead of 1-lane masked stores.
    o_ref[...] = jnp.reshape(y, (1, tile_b)).astype(o_ref.dtype)


def _default_vmem_limit_bytes():
    """~75% of physical VMEM: ~96 MiB on v5e/v6e (128 MiB), ~48 MiB on v7x (64 MiB)."""
    try:
        cap = int(pltpu.get_tpu_info().vmem_capacity_bytes)
    except Exception:
        cap = 64 * 1024 * 1024        # conservative fallback (v7x physical size)
    return (cap * 3) // 4


def _choose_tile_b(B, F, vmem_limit_bytes):
    """Byte-based batch tile: as large as the VMEM budget allows (multi-MiB blocks)."""
    itemsize = 4                                 # f32
    f_pad = pl.cdiv(F, 128) * 128                # minor dim is lane-padded in VMEM
    x_row = f_pad * itemsize                     # VMEM bytes per x row
    o_row = 8 * itemsize                         # out column padded to 8 sublanes

    # Small-problem fast path: single full-array block, no batch tiling.
    if B * x_row <= 2 * 1024 * 1024:
        return B

    headroom = 4 * 1024 * 1024                   # resident weight (x2), Mosaic scratch, ...
    per_buffer = max((vmem_limit_bytes - headroom) // 2, 0)   # x & out are double-buffered
    per_buffer = min(per_buffer, 20 * 1024 * 1024)            # diminishing returns past ~16 MiB
    tile_b = max(per_buffer // (x_row + o_row), 128)

    # Keep both v7x TensorCores busy on large problems (grid_b >= 2).
    tile_b = min(tile_b, pl.cdiv(B, 2))

    # Lane-dense output store + (8,128) BlockSpec rule: multiple of 128 (or full B).
    tile_b = max((tile_b // 128) * 128, 128)
    return min(tile_b, B)


def logistic_regression(x, weight, bias, *, tile_b=None, vmem_limit_bytes=None):
    """x: (B, F) f32; weight: (1, F) f32 (PyTorch nn.Linear layout); bias: (1,) f32."""
    B, F = x.shape
    weight = weight.reshape(1, F)
    b2 = bias.reshape(1, 1)                      # SMEM scalar

    if vmem_limit_bytes is None:
        vmem_limit_bytes = _default_vmem_limit_bytes()
    if tile_b is None:
        tile_b = _choose_tile_b(B, F, vmem_limit_bytes)
    tile_b = min(tile_b, B)
    if tile_b != B:
        # Multiple of 128 keeps both the x block and the (1, tile_b) output
        # block legal and the output store fully lane-dense.
        tile_b = max((tile_b // 128) * 128, 128)
        if tile_b >= B:
            tile_b = B
    grid_b = pl.cdiv(B, tile_b)

    out_row = pl.pallas_call(
        logistic_kernel,
        out_shape=jax.ShapeDtypeStruct((1, B), x.dtype),
        grid_spec=pltpu.PrefetchScalarGridSpec(
            num_scalar_prefetch=0,
            grid=(grid_b,),
            in_specs=[
                # x streams over the batch, double-buffered by the pipeline.
                pl.BlockSpec((tile_b, F), lambda i: (i, 0)),
                # Weight stays resident (same block every grid step).  Left at
                # the default buffer count: the extra buffer is only F*4 bytes.
                pl.BlockSpec((1, F), lambda i: (0, 0)),
                # Bias as an SMEM scalar — no VMEM stream for it.
                pl.BlockSpec(memory_space=pltpu.MemorySpace.SMEM),
            ],
            # Lane-dense (1, tile_b) output blocks; OOB columns of a ragged
            # final tile are masked on store.
            out_specs=pl.BlockSpec((1, tile_b), lambda i: (0, i)),
        ),
        compiler_params=pltpu.CompilerParams(
            # Batch blocks are independent -> shard across TCs on v7x.
            dimension_semantics=("parallel",),
            vmem_limit_bytes=int(vmem_limit_bytes),
        ),
    )(x, weight, b2)

    return out_row.reshape(B, 1)


if __name__ == "__main__":
    key = jax.random.PRNGKey(0)
    kx1, kx2, kw, kb = jax.random.split(key, 4)

    F = 32                                        # input_features
    # Deterministic parameter init mimicking nn.Linear(F, 1):
    # uniform(-1/sqrt(F), 1/sqrt(F)) for weight (1, F) and bias (1,).
    bound = 1.0 / float(F) ** 0.5
    weight = jax.random.uniform(kw, (1, F), minval=-bound, maxval=bound,
                                dtype=jnp.float32)
    bias = jax.random.uniform(kb, (1,), minval=-bound, maxval=bound,
                              dtype=jnp.float32)

    # Case 1: small problem -> single-block fast path (grid=(1,)).
    B1 = 128
    x1 = jax.random.normal(kx1, (B1, F), dtype=jnp.float32)
    out1 = logistic_regression(x1, weight, bias)
    jax.block_until_ready(out1)
    ref1 = jax.nn.sigmoid(x1 @ weight.T + bias)
    assert out1.shape == (B1, 1)
    assert jnp.allclose(out1, ref1, atol=1e-5, rtol=1e-5)

    # Case 2: forced multi-step pipeline with a ragged final tile (grid=4),
    # exercising the lane-dense output masking path.
    B2 = 1000
    x2 = jax.random.normal(kx2, (B2, F), dtype=jnp.float32)
    out2 = logistic_regression(x2, weight, bias, tile_b=256)
    jax.block_until_ready(out2)
    ref2 = jax.nn.sigmoid(x2 @ weight.T + bias)
    assert out2.shape == (B2, 1)
    assert jnp.allclose(out2, ref2, atol=1e-5, rtol=1e-5)

    print("KERNEL_OK")
</pallas_src>

<mosaic_0001>
module attributes {stable_mosaic.version = 11 : i64} {
  func.func @logistic_kernel(%arg0: i32, %arg1: memref<128x32xf32, #tpu.memory_space<vmem>>, %arg2: memref<1x32xf32, #tpu.memory_space<vmem>>, %arg3: memref<1x1xf32, #tpu.memory_space<smem>>, %arg4: memref<1x128xf32, #tpu.memory_space<vmem>>) attributes {dimension_semantics = [#tpu.dimension_semantics<parallel>], iteration_bounds = array<i64: 1>, scalar_prefetch = 0 : i64, scratch_operands = 0 : i64, tpu.core_type = #tpu.core_type<tc>, window_params = [{transform_indices = @transform_0, window_bounds = array<i64: 128, 32>}, {pipeline_mode = #tpu.pipeline_mode<synchronous>, transform_indices = @transform_1, window_bounds = array<i64: 1, 32>}, {transform_indices = @transform_2, window_bounds = array<i64: 1, 1>}, {transform_indices = @transform_3, window_bounds = array<i64: 1, 128>}]} {
    %c0 = arith.constant 0 : index
    %c0_0 = arith.constant 0 : index
    %0 = vector.load %arg1[%c0, %c0_0] : memref<128x32xf32, #tpu.memory_space<vmem>>, vector<128x32xf32>
    %c0_1 = arith.constant 0 : index
    %c0_2 = arith.constant 0 : index
    %1 = vector.load %arg2[%c0_1, %c0_2] : memref<1x32xf32, #tpu.memory_space<vmem>>, vector<1x32xf32>
    %2 = vector.broadcast %1 : vector<1x32xf32> to vector<128x32xf32>
    %3 = arith.mulf %0, %2 : vector<128x32xf32>
    %cst = arith.constant dense<0.000000e+00> : vector<128xf32>
    %4 = vector.multi_reduction <add>, %3, %cst [1] : vector<128x32xf32> to vector<128xf32>
    %5 = vector.shape_cast %4 : vector<128xf32> to vector<128x1xf32>
    %c0_3 = arith.constant 0 : index
    %c0_4 = arith.constant 0 : index
    %6 = memref.load %arg3[%c0_3, %c0_4] : memref<1x1xf32, #tpu.memory_space<smem>>
    %7 = vector.broadcast %6 : f32 to vector<128x1xf32>
    %8 = arith.addf %5, %7 : vector<128x1xf32>
    %9 = arith.negf %8 : vector<128x1xf32>
    %10 = math.exp %9 : vector<128x1xf32>
    %cst_5 = arith.constant 1.000000e+00 : f32
    %11 = vector.broadcast %cst_5 : f32 to vector<128x1xf32>
    %12 = arith.addf %11, %10 : vector<128x1xf32>
    %13 = arith.divf %11, %12 : vector<128x1xf32>
    %14 = vector.shape_cast %13 : vector<128x1xf32> to vector<1x128xf32>
    %c0_6 = arith.constant 0 : index
    %c0_7 = arith.constant 0 : index
    %15 = vector.load %arg4[%c0_6, %c0_7] : memref<1x128xf32, #tpu.memory_space<vmem>>, vector<1x128xf32>
    tpu.vector_store %arg4[%c0_6, %c0_7], %14 {strides = array<i32>} : memref<1x128xf32, #tpu.memory_space<vmem>>, vector<1x128xf32>,
    return
  }
  func.func @transform_0(%arg0: i32) -> (i32, i32) {
    %c0_i32 = arith.constant 0 : i32
    %c0_i32_0 = arith.constant 0 : i32
    return %arg0, %c0_i32 : i32, i32
  }
  func.func @transform_1(%arg0: i32) -> (i32, i32) {
    %c0_i32 = arith.constant 0 : i32
    %c0_i32_0 = arith.constant 0 : i32
    %c0_i32_1 = arith.constant 0 : i32
    return %c0_i32, %c0_i32_0 : i32, i32
  }
  func.func @transform_2(%arg0: i32) -> (i32, i32) {
    %c0_i32 = arith.constant 0 : i32
    %c0_i32_0 = arith.constant 0 : i32
    %c0_i32_1 = arith.constant 0 : i32
    return %c0_i32, %c0_i32_0 : i32, i32
  }
  func.func @transform_3(%arg0: i32) -> (i32, i32) {
    %c0_i32 = arith.constant 0 : i32
    %c0_i32_0 = arith.constant 0 : i32
    return %c0_i32, %arg0 : i32, i32
  }
}

</mosaic_0001>

<llo_original>
// kernel: tpu_custom_call.1
$region0: #{tpu_custom_call.1}
  #allocation0 [shape = 'u32[]', space=smem, size = 0x4, offset = 0x4, fixed_abs, tag = 'smem constant byte address 0x4 - core index']
  #allocation1 [shape = 'u32[72,128]{1,0:T(1,128)}', space=vmem, size = 0x9000, scoped, tag = 'internal scratch']
  #allocation2 [shape = 'f32[1,1]{1,0:T(1,128)S(6)}', space=smem, size = 0x200, scoped, tag = 'scoped memory for tpu_custom_call.1']
  %s0 = inlined_call_operand.vmem [shape: f32[128,32], index: 0, kind: input, shape index: {}]
  %s1 = inlined_call_operand.vmem [shape: f32[1,32], index: 1, kind: input, shape index: {}]
  %s2 = inlined_call_operand.<no memory space> [shape: f32[1,1], index: 2, kind: input, shape index: {}]
  %s3 = inlined_call_operand.hbm [shape: f32[1,128], index: 3, kind: output, shape index: {}]
  %s4 = sld [smem:[#allocation0]]
  $region22: #{tpu_custom_call.1} parent=0
    _
  %s6 = ssub.s32 1, %s4
  %s7 = scalar_select 0, %s6, %s4
  %8 = sst [smem:[#allocation2]] %s2
  $region1: #{tpu_custom_call.1} parent=0
    #allocation3 [shape = 'u8[512]{0}', space=vmem, size = 0x400, scoped, tag = 'output window, operand 0, single buffered']
    #allocation4 [shape = 's32[1]{0}', space=sflag, size = 0x4, scoped, tag = 'scoped memory for tpu_custom_call.1']
    %9 = vsyncpa [#allocation4], 0
    // Predicated region
    $region2: #{tpu_custom_call.1} parent=1 // pred_check
      _
    $region3: #{tpu_custom_call.1} parent=1 // pred_check_branch
      %11 = sbr.rel (0) target = $region5
    $region4: #{tpu_custom_call.1} parent=1 // pred_region
      _
    $region5: #{tpu_custom_call.1} parent=1 // pred_fallthru
      _
    // Predicated region
    $region6: #{tpu_custom_call.1} parent=1 // pred_check
      _
    $region7: #{tpu_custom_call.1} parent=1 // pred_check_branch
      %13 = sbr.rel (0) target = $region9
    $region8: #{tpu_custom_call.1} parent=1 // pred_region
      _
    $region9: #{tpu_custom_call.1} parent=1 // pred_fallthru
      _
    // Predicated region
    $region10: #{tpu_custom_call.1} parent=1 // pred_check
      _
    $region11: #{tpu_custom_call.1} parent=1 // pred_check_branch
      %15 = sbr.rel (0) target = $region13
    $region12: #{tpu_custom_call.1} parent=1 // pred_region
      _
    $region13: #{tpu_custom_call.1} parent=1 // pred_fallthru
      _
    %v16 = vld [vmem:[%s0] sm:$0xff]
    %v17 = vld [vmem:[%s0 + $0x8] sm:$0xff]
    %v18 = vld [vmem:[%s0 + $0x10] sm:$0xff]
    %v19 = vld [vmem:[%s0 + $0x18] sm:$0xff]
    %v20 = vld [vmem:[%s0 + $0x20] sm:$0xff]
    %v21 = vld [vmem:[%s0 + $0x28] sm:$0xff]
    %v22 = vld [vmem:[%s0 + $0x30] sm:$0xff]
    %v23 = vld [vmem:[%s0 + $0x38] sm:$0xff]
    %v24 = vld [vmem:[%s0 + $0x40] sm:$0xff]
    %v25 = vld [vmem:[%s0 + $0x48] sm:$0xff]
    %v26 = vld [vmem:[%s0 + $0x50] sm:$0xff]
    %v27 = vld [vmem:[%s0 + $0x58] sm:$0xff]
    %v28 = vld [vmem:[%s0 + $0x60] sm:$0xff]
    %v29 = vld [vmem:[%s0 + $0x68] sm:$0xff]
    %v30 = vld [vmem:[%s0 + $0x70] sm:$0xff]
    %v31 = vld [vmem:[%s0 + $0x78] sm:$0xff]
    %v32 = vld [vmem:[%s1] sm:$0x1]
    %v34 = vperm.slane %v32, 0
    %v36 = vmul.f32 %v16, %v34
    %v37 = vmul.f32 %v17, %v34
    %v38 = vmul.f32 %v18, %v34
    %v39 = vmul.f32 %v19, %v34
    %v40 = vmul.f32 %v20, %v34
    %v41 = vmul.f32 %v21, %v34
    %v42 = vmul.f32 %v22, %v34
    %v43 = vmul.f32 %v23, %v34
    %v44 = vmul.f32 %v24, %v34
    %v45 = vmul.f32 %v25, %v34
    %v46 = vmul.f32 %v26, %v34
    %v47 = vmul.f32 %v27, %v34
    %v48 = vmul.f32 %v28, %v34
    %v49 = vmul.f32 %v29, %v34
    %v50 = vmul.f32 %v30, %v34
    %v51 = vmul.f32 %v31, %v34
    %vm52 = vcmask 261120
    %v53 = vsel %vm52, %v36, 0.0
    %54 = vadd.xlane.f32.xlu0 %v53
    %v55 = vpop.xlane.xlu0 %54
    %v56 = vsel %vm52, %v37, 0.0
    %57 = vadd.xlane.f32.xlu0 %v56
    %v58 = vpop.xlane.xlu0 %57
    %v59 = vsel %vm52, %v38, 0.0
    %60 = vadd.xlane.f32.xlu0 %v59
    %v61 = vpop.xlane.xlu0 %60
    %v62 = vsel %vm52, %v39, 0.0
    %63 = vadd.xlane.f32.xlu0 %v62
    %v64 = vpop.xlane.xlu0 %63
    %v65 = vsel %vm52, %v40, 0.0
    %66 = vadd.xlane.f32.xlu0 %v65
    %v67 = vpop.xlane.xlu0 %66
    %v68 = vsel %vm52, %v41, 0.0
    %69 = vadd.xlane.f32.xlu0 %v68
    %v70 = vpop.xlane.xlu0 %69
    %v71 = vsel %vm52, %v42, 0.0
    %72 = vadd.xlane.f32.xlu0 %v71
    %v73 = vpop.xlane.xlu0 %72
    %v74 = vsel %vm52, %v43, 0.0
    %75 = vadd.xlane.f32.xlu0 %v74
    %v76 = vpop.xlane.xlu0 %75
    %v77 = vsel %vm52, %v44, 0.0
    %78 = vadd.xlane.f32.xlu0 %v77
    %v79 = vpop.xlane.xlu0 %78
    %v80 = vsel %vm52, %v45, 0.0
    %81 = vadd.xlane.f32.xlu0 %v80
    %v82 = vpop.xlane.xlu0 %81
    %v83 = vsel %vm52, %v46, 0.0
    %84 = vadd.xlane.f32.xlu0 %v83
    %v85 = vpop.xlane.xlu0 %84
    %v86 = vsel %vm52, %v47, 0.0
    %87 = vadd.xlane.f32.xlu0 %v86
    %v88 = vpop.xlane.xlu0 %87
    %v89 = vsel %vm52, %v48, 0.0
    %90 = vadd.xlane.f32.xlu0 %v89
    %v91 = vpop.xlane.xlu0 %90
    %v92 = vsel %vm52, %v49, 0.0
    %93 = vadd.xlane.f32.xlu0 %v92
    %v94 = vpop.xlane.xlu0 %93
    %v95 = vsel %vm52, %v50, 0.0
    %96 = vadd.xlane.f32.xlu0 %v95
    %v97 = vpop.xlane.xlu0 %96
    %v98 = vsel %vm52, %v51, 0.0
    %99 = vadd.xlane.f32.xlu0 %v98
    %v100 = vpop.xlane.xlu0 %99
    %s101 = sld [smem:[#allocation2]]
    %v102 = vstv %s101
    %v103 = vadd.f32 %v55, %v102
    %v104 = vadd.f32 %v58, %v102
    %v105 = vadd.f32 %v61, %v102
    %v106 = vadd.f32 %v64, %v102
    %v107 = vadd.f32 %v67, %v102
    %v108 = vadd.f32 %v70, %v102
    %v109 = vadd.f32 %v73, %v102
    %v110 = vadd.f32 %v76, %v102
    %v111 = vadd.f32 %v79, %v102
    %v112 = vadd.f32 %v82, %v102
    %v113 = vadd.f32 %v85, %v102
    %v114 = vadd.f32 %v88, %v102
    %v115 = vadd.f32 %v91, %v102
    %v116 = vadd.f32 %v94, %v102
    %v117 = vadd.f32 %v97, %v102
    %v118 = vadd.f32 %v100, %v102
    %v119 = vxor.u32 %v103, 2147483648
    %v120 = vxor.u32 %v104, 2147483648
    %v121 = vxor.u32 %v105, 2147483648
    %v122 = vxor.u32 %v106, 2147483648
    %v123 = vxor.u32 %v107, 2147483648
    %v124 = vxor.u32 %v108, 2147483648
    %v125 = vxor.u32 %v109, 2147483648
    %v126 = vxor.u32 %v110, 2147483648
    %v127 = vxor.u32 %v111, 2147483648
    %v128 = vxor.u32 %v112, 2147483648
    %v129 = vxor.u32 %v113, 2147483648
    %v130 = vxor.u32 %v114, 2147483648
    %v131 = vxor.u32 %v115, 2147483648
    %v132 = vxor.u32 %v116, 2147483648
    %v133 = vxor.u32 %v117, 2147483648
    %v134 = vxor.u32 %v118, 2147483648
    %v135 = vmul.f32 %v119, 1.442695
    %v136 = vpow.pop %v135
    %v137 = vmul.f32 %v120, 1.442695
    %v138 = vpow.pop %v137
    %v139 = vmul.f32 %v121, 1.442695
    %v140 = vpow.pop %v139
    %v141 = vmul.f32 %v122, 1.442695
    %v142 = vpow.pop %v141
    %v143 = vmul.f32 %v123, 1.442695
    %v144 = vpow.pop %v143
    %v145 = vmul.f32 %v124, 1.442695
    %v146 = vpow.pop %v145
    %v147 = vmul.f32 %v125, 1.442695
    %v148 = vpow.pop %v147
    %v149 = vmul.f32 %v126, 1.442695
    %v150 = vpow.pop %v149
    %v151 = vmul.f32 %v127, 1.442695
    %v152 = vpow.pop %v151
    %v153 = vmul.f32 %v128, 1.442695
    %v154 = vpow.pop %v153
    %v155 = vmul.f32 %v129, 1.442695
    %v156 = vpow.pop %v155
    %v157 = vmul.f32 %v130, 1.442695
    %v158 = vpow.pop %v157
    %v159 = vmul.f32 %v131, 1.442695
    %v160 = vpow.pop %v159
    %v161 = vmul.f32 %v132, 1.442695
    %v162 = vpow.pop %v161
    %v163 = vmul.f32 %v133, 1.442695
    %v164 = vpow.pop %v163
    %v165 = vmul.f32 %v134, 1.442695
    %v166 = vpow.pop %v165
    %v167 = vadd.f32 %v136, 1.0
    %v168 = vadd.f32 %v138, 1.0
    %v169 = vadd.f32 %v140, 1.0
    %v170 = vadd.f32 %v142, 1.0
    %v171 = vadd.f32 %v144, 1.0
    %v172 = vadd.f32 %v146, 1.0
    %v173 = vadd.f32 %v148, 1.0
    %v174 = vadd.f32 %v150, 1.0
    %v175 = vadd.f32 %v152, 1.0
    %v176 = vadd.f32 %v154, 1.0
    %v177 = vadd.f32 %v156, 1.0
    %v178 = vadd.f32 %v158, 1.0
    %v179 = vadd.f32 %v160, 1.0
    %v180 = vadd.f32 %v162, 1.0
    %v181 = vadd.f32 %v164, 1.0
    %v182 = vadd.f32 %v166, 1.0
    %v183 = vrcp.pop %v167
    %v184 = vmul.f32 %v167, %v183
    %v185 = vsub.f32 1.0, %v184
    %v186 = vmul.f32 %v183, %v185
    %v187 = vadd.f32 %v183, %v186
    %vm188 = vweird.f32 %v167
    %vm189 = vweird.f32 %v183
    %vm190 = vmor %vm188, %vm189
    %v191 = vsel %vm190, %v183, %v187
    %v192 = vand.u32 2147483647, %v167
    %vm193 = vcmp.eq.f32.partialorder %v192, 8.507059e+37
    %v194 = vand.u32 %v167, 2147483648
    %v195 = vor.u32 1.1754944e-38, %v194
    %v196 = vsel %vm193, %v195, %v191
    %v197 = vmul.f32 1.0, %v196
    %v198 = vrcp.pop %v168
    %v199 = vmul.f32 %v168, %v198
    %v200 = vsub.f32 1.0, %v199
    %v201 = vmul.f32 %v198, %v200
    %v202 = vadd.f32 %v198, %v201
    %vm203 = vweird.f32 %v168
    %vm204 = vweird.f32 %v198
    %vm205 = vmor %vm203, %vm204
    %v206 = vsel %vm205, %v198, %v202
    %v207 = vand.u32 2147483647, %v168
    %vm208 = vcmp.eq.f32.partialorder %v207, 8.507059e+37
    %v209 = vand.u32 %v168, 2147483648
    %v210 = vor.u32 1.1754944e-38, %v209
    %v211 = vsel %vm208, %v210, %v206
    %v212 = vmul.f32 1.0, %v211
    %v213 = vrcp.pop %v169
    %v214 = vmul.f32 %v169, %v213
    %v215 = vsub.f32 1.0, %v214
    %v216 = vmul.f32 %v213, %v215
    %v217 = vadd.f32 %v213, %v216
    %vm218 = vweird.f32 %v169
    %vm219 = vweird.f32 %v213
    %vm220 = vmor %vm218, %vm219
    %v221 = vsel %vm220, %v213, %v217
    %v222 = vand.u32 2147483647, %v169
    %vm223 = vcmp.eq.f32.partialorder %v222, 8.507059e+37
    %v224 = vand.u32 %v169, 2147483648
    %v225 = vor.u32 1.1754944e-38, %v224
    %v226 = vsel %vm223, %v225, %v221
    %v227 = vmul.f32 1.0, %v226
    %v228 = vrcp.pop %v170
    %v229 = vmul.f32 %v170, %v228
    %v230 = vsub.f32 1.0, %v229
    %v231 = vmul.f32 %v228, %v230
    %v232 = vadd.f32 %v228, %v231
    %vm233 = vweird.f32 %v170
    %vm234 = vweird.f32 %v228
    %vm235 = vmor %vm233, %vm234
    %v236 = vsel %vm235, %v228, %v232
    %v237 = vand.u32 2147483647, %v170
    %vm238 = vcmp.eq.f32.partialorder %v237, 8.507059e+37
    %v239 = vand.u32 %v170, 2147483648
    %v240 = vor.u32 1.1754944e-38, %v239
    %v241 = vsel %vm238, %v240, %v236
    %v242 = vmul.f32 1.0, %v241
    %v243 = vrcp.pop %v171
    %v244 = vmul.f32 %v171, %v243
    %v245 = vsub.f32 1.0, %v244
    %v246 = vmul.f32 %v243, %v245
    %v247 = vadd.f32 %v243, %v246
    %vm248 = vweird.f32 %v171
    %vm249 = vweird.f32 %v243
    %vm250 = vmor %vm248, %vm249
    %v251 = vsel %vm250, %v243, %v247
    %v252 = vand.u32 2147483647, %v171
    %vm253 = vcmp.eq.f32.partialorder %v252, 8.507059e+37
    %v254 = vand.u32 %v171, 2147483648
    %v255 = vor.u32 1.1754944e-38, %v254
    %v256 = vsel %vm253, %v255, %v251
    %v257 = vmul.f32 1.0, %v256
    %v258 = vrcp.pop %v172
    %v259 = vmul.f32 %v172, %v258
    %v260 = vsub.f32 1.0, %v259
    %v261 = vmul.f32 %v258, %v260
    %v262 = vadd.f32 %v258, %v261
    %vm263 = vweird.f32 %v172
    %vm264 = vweird.f32 %v258
    %vm265 = vmor %vm263, %vm264
    %v266 = vsel %vm265, %v258, %v262
    %v267 = vand.u32 2147483647, %v172
    %vm268 = vcmp.eq.f32.partialorder %v267, 8.507059e+37
    %v269 = vand.u32 %v172, 2147483648
    %v270 = vor.u32 1.1754944e-38, %v269
    %v271 = vsel %vm268, %v270, %v266
    %v272 = vmul.f32 1.0, %v271
    %v273 = vrcp.pop %v173
    %v274 = vmul.f32 %v173, %v273
    %v275 = vsub.f32 1.0, %v274
    %v276 = vmul.f32 %v273, %v275
    %v277 = vadd.f32 %v273, %v276
    %vm278 = vweird.f32 %v173
    %vm279 = vweird.f32 %v273
    %vm280 = vmor %vm278, %vm279
    %v281 = vsel %vm280, %v273, %v277
    %v282 = vand.u32 2147483647, %v173
    %vm283 = vcmp.eq.f32.partialorder %v282, 8.507059e+37
    %v284 = vand.u32 %v173, 2147483648
    %v285 = vor.u32 1.1754944e-38, %v284
    %v286 = vsel %vm283, %v285, %v281
    %v287 = vmul.f32 1.0, %v286
    %v288 = vrcp.pop %v174
    %v289 = vmul.f32 %v174, %v288
    %v290 = vsub.f32 1.0, %v289
    %v291 = vmul.f32 %v288, %v290
    %v292 = vadd.f32 %v288, %v291
    %vm293 = vweird.f32 %v174
    %vm294 = vweird.f32 %v288
    %vm295 = vmor %vm293, %vm294
    %v296 = vsel %vm295, %v288, %v292
    %v297 = vand.u32 2147483647, %v174
    %vm298 = vcmp.eq.f32.partialorder %v297, 8.507059e+37
    %v299 = vand.u32 %v174, 2147483648
    %v300 = vor.u32 1.1754944e-38, %v299
    %v301 = vsel %vm298, %v300, %v296
    %v302 = vmul.f32 1.0, %v301
    %v303 = vrcp.pop %v175
    %v304 = vmul.f32 %v175, %v303
    %v305 = vsub.f32 1.0, %v304
    %v306 = vmul.f32 %v303, %v305
    %v307 = vadd.f32 %v303, %v306
    %vm308 = vweird.f32 %v175
    %vm309 = vweird.f32 %v303
    %vm310 = vmor %vm308, %vm309
    %v311 = vsel %vm310, %v303, %v307
    %v312 = vand.u32 2147483647, %v175
    %vm313 = vcmp.eq.f32.partialorder %v312, 8.507059e+37
    %v314 = vand.u32 %v175, 2147483648
    %v315 = vor.u32 1.1754944e-38, %v314
    %v316 = vsel %vm313, %v315, %v311
    %v317 = vmul.f32 1.0, %v316
    %v318 = vrcp.pop %v176
    %v319 = vmul.f32 %v176, %v318
    %v320 = vsub.f32 1.0, %v319
    %v321 = vmul.f32 %v318, %v320
    %v322 = vadd.f32 %v318, %v321
    %vm323 = vweird.f32 %v176
    %vm324 = vweird.f32 %v318
    %vm325 = vmor %vm323, %vm324
    %v326 = vsel %vm325, %v318, %v322
    %v327 = vand.u32 2147483647, %v176
    %vm328 = vcmp.eq.f32.partialorder %v327, 8.507059e+37
    %v329 = vand.u32 %v176, 2147483648
    %v330 = vor.u32 1.1754944e-38, %v329
    %v331 = vsel %vm328, %v330, %v326
    %v332 = vmul.f32 1.0, %v331
    %v333 = vrcp.pop %v177
    %v334 = vmul.f32 %v177, %v333
    %v335 = vsub.f32 1.0, %v334
    %v336 = vmul.f32 %v333, %v335
    %v337 = vadd.f32 %v333, %v336
    %vm338 = vweird.f32 %v177
    %vm339 = vweird.f32 %v333
    %vm340 = vmor %vm338, %vm339
    %v341 = vsel %vm340, %v333, %v337
    %v342 = vand.u32 2147483647, %v177
    %vm343 = vcmp.eq.f32.partialorder %v342, 8.507059e+37
    %v344 = vand.u32 %v177, 2147483648
    %v345 = vor.u32 1.1754944e-38, %v344
    %v346 = vsel %vm343, %v345, %v341
    %v347 = vmul.f32 1.0, %v346
    %v348 = vrcp.pop %v178
    %v349 = vmul.f32 %v178, %v348
    %v350 = vsub.f32 1.0, %v349
    %v351 = vmul.f32 %v348, %v350
    %v352 = vadd.f32 %v348, %v351
    %vm353 = vweird.f32 %v178
    %vm354 = vweird.f32 %v348
    %vm355 = vmor %vm353, %vm354
    %v356 = vsel %vm355, %v348, %v352
    %v357 = vand.u32 2147483647, %v178
    %vm358 = vcmp.eq.f32.partialorder %v357, 8.507059e+37
    %v359 = vand.u32 %v178, 2147483648
    %v360 = vor.u32 1.1754944e-38, %v359
    %v361 = vsel %vm358, %v360, %v356
    %v362 = vmul.f32 1.0, %v361
    %v363 = vrcp.pop %v179
    %v364 = vmul.f32 %v179, %v363
    %v365 = vsub.f32 1.0, %v364
    %v366 = vmul.f32 %v363, %v365
    %v367 = vadd.f32 %v363, %v366
    %vm368 = vweird.f32 %v179
    %vm369 = vweird.f32 %v363
    %vm370 = vmor %vm368, %vm369
    %v371 = vsel %vm370, %v363, %v367
    %v372 = vand.u32 2147483647, %v179
    %vm373 = vcmp.eq.f32.partialorder %v372, 8.507059e+37
    %v374 = vand.u32 %v179, 2147483648
    %v375 = vor.u32 1.1754944e-38, %v374
    %v376 = vsel %vm373, %v375, %v371
    %v377 = vmul.f32 1.0, %v376
    %v378 = vrcp.pop %v180
    %v379 = vmul.f32 %v180, %v378
    %v380 = vsub.f32 1.0, %v379
    %v381 = vmul.f32 %v378, %v380
    %v382 = vadd.f32 %v378, %v381
    %vm383 = vweird.f32 %v180
    %vm384 = vweird.f32 %v378
    %vm385 = vmor %vm383, %vm384
    %v386 = vsel %vm385, %v378, %v382
    %v387 = vand.u32 2147483647, %v180
    %vm388 = vcmp.eq.f32.partialorder %v387, 8.507059e+37
    %v389 = vand.u32 %v180, 2147483648
    %v390 = vor.u32 1.1754944e-38, %v389
    %v391 = vsel %vm388, %v390, %v386
    %v392 = vmul.f32 1.0, %v391
    %v393 = vrcp.pop %v181
    %v394 = vmul.f32 %v181, %v393
    %v395 = vsub.f32 1.0, %v394
    %v396 = vmul.f32 %v393, %v395
    %v397 = vadd.f32 %v393, %v396
    %vm398 = vweird.f32 %v181
    %vm399 = vweird.f32 %v393
    %vm400 = vmor %vm398, %vm399
    %v401 = vsel %vm400, %v393, %v397
    %v402 = vand.u32 2147483647, %v181
    %vm403 = vcmp.eq.f32.partialorder %v402, 8.507059e+37
    %v404 = vand.u32 %v181, 2147483648
    %v405 = vor.u32 1.1754944e-38, %v404
    %v406 = vsel %vm403, %v405, %v401
    %v407 = vmul.f32 1.0, %v406
    %v408 = vrcp.pop %v182
    %v409 = vmul.f32 %v182, %v408
    %v410 = vsub.f32 1.0, %v409
    %v411 = vmul.f32 %v408, %v410
    %v412 = vadd.f32 %v408, %v411
    %vm413 = vweird.f32 %v182
    %vm414 = vweird.f32 %v408
    %vm415 = vmor %vm413, %vm414
    %v416 = vsel %vm415, %v408, %v412
    %v417 = vand.u32 2147483647, %v182
    %vm418 = vcmp.eq.f32.partialorder %v417, 8.507059e+37
    %v419 = vand.u32 %v182, 2147483648
    %v420 = vor.u32 1.1754944e-38, %v419
    %v421 = vsel %vm418, %v420, %v416
    %v422 = vmul.f32 1.0, %v421
    %v439 = vlaneseq
    %v440 = vand.u32 %v439, 127
    %v441 = vperm.slane %v197, %v440
    %v442 = vadd.s32 %v440, 4294967288
    %v443 = vperm.slane %v212, %v442
    %vm444 = vcmask 130112
    %v445 = vsel %vm444, %v443, %v441
    %v446 = vadd.s32 %v440, 4294967280
    %v447 = vperm.slane %v227, %v446
    %vm448 = vcmask 195712
    %v449 = vsel %vm448, %v447, %v445
    %v450 = vadd.s32 %v440, 4294967272
    %v451 = vperm.slane %v242, %v450
    %vm452 = vcmask 261312
    %v453 = vsel %vm452, %v451, %v449
    %v454 = vadd.s32 %v440, 4294967264
    %v455 = vperm.slane %v257, %v454
    %vm456 = vcmask 326912
    %v457 = vsel %vm456, %v455, %v453
    %v458 = vadd.s32 %v440, 4294967256
    %v459 = vperm.slane %v272, %v458
    %vm460 = vcmask 392512
    %v461 = vsel %vm460, %v459, %v457
    %v462 = vadd.s32 %v440, 4294967248
    %v463 = vperm.slane %v287, %v462
    %vm464 = vcmask 458112
    %v465 = vsel %vm464, %v463, %v461
    %v466 = vadd.s32 %v440, 4294967240
    %v467 = vperm.slane %v302, %v466
    %vm468 = vcmask 523712
    %v469 = vsel %vm468, %v467, %v465
    %v470 = vadd.s32 %v440, 4294967232
    %v471 = vperm.slane %v317, %v470
    %vm472 = vcmask 589312
    %v473 = vsel %vm472, %v471, %v469
    %v474 = vadd.s32 %v440, 4294967224
    %v475 = vperm.slane %v332, %v474
    %vm476 = vcmask 654912
    %v477 = vsel %vm476, %v475, %v473
    %v478 = vadd.s32 %v440, 4294967216
    %v479 = vperm.slane %v347, %v478
    %vm480 = vcmask 720512
    %v481 = vsel %vm480, %v479, %v477
    %v482 = vadd.s32 %v440, 4294967208
    %v483 = vperm.slane %v362, %v482
    %vm484 = vcmask 786112
    %v485 = vsel %vm484, %v483, %v481
    %v486 = vadd.s32 %v440, 4294967200
    %v487 = vperm.slane %v377, %v486
    %vm488 = vcmask 851712
    %v489 = vsel %vm488, %v487, %v485
    %v490 = vadd.s32 %v440, 4294967192
    %v491 = vperm.slane %v392, %v490
    %vm492 = vcmask 917312
    %v493 = vsel %vm492, %v491, %v489
    %v494 = vadd.s32 %v440, 4294967184
    %v495 = vperm.slane %v407, %v494
    %vm496 = vcmask 982912
    %v497 = vsel %vm496, %v495, %v493
    %v498 = vadd.s32 %v440, 4294967176
    %v499 = vperm.slane %v422, %v498
    %vm500 = vcmask 1048512
    %v501 = vsel %vm500, %v499, %v497
    %503 = vst [vmem:[#allocation3] sm:$0x1] %v501
    // Predicated region
    $region14: #{tpu_custom_call.1} parent=1 // pred_check
      _
    $region15: #{tpu_custom_call.1} parent=1 // pred_check_branch
      %505 = sbr.rel (0) target = $region17
    $region16: #{tpu_custom_call.1} parent=1 // pred_region
      %507 = vsyncadd [#allocation4], 0
      %s509 = sshll.u32 [#allocation3], 4
      %s510 = int_to_ptr.vmem [resolvable:$true] %s509
      %s511 = sshll.u32 %s3, 4
      %s512 = int_to_ptr.hbm [resolvable:$true] %s511
      %514 = dma.vmem_to_hbm [thread:$0]  %s510, 16, %s512, [#allocation4]
    $region17: #{tpu_custom_call.1} parent=1 // pred_fallthru
      _
    // Predicated region
    $region18: #{tpu_custom_call.1} parent=1 // pred_check
      _
    $region19: #{tpu_custom_call.1} parent=1 // pred_check_branch
      %516 = sbr.rel (0) target = $region21
    $region20: #{tpu_custom_call.1} parent=1 // pred_region
      %518 = dma.done [#allocation4], 16
    $region21: #{tpu_custom_call.1} parent=1 // pred_fallthru
      _
    %519 = vsyncpa [#allocation4], 1

</llo_original>
